<compile_context>
chip_gen: v7x
topology: tpu7x:2x2x1
jax: 0.10.0
libtpu: 0.0.40
codegen_flags: <defaults>
</compile_context>

<pallas_src>
import functools

import jax
import jax.numpy as jnp
from jax.experimental import pallas as pl
from jax.experimental.pallas import tpu as pltpu


_DIRECT_MIN_BLOCK_BYTES = 2048              # narrower blocks -> VMEM staging
_VMEM_PIPELINE_BUDGET = 28 * 1024 * 1024    # pipeline buffers; fits v7x 64 MiB


# ----------------------------------------------------------------------------
# Path 1: wide blocks -> direct HBM->HBM DMAs (no VMEM at all).
# ----------------------------------------------------------------------------
def _shuffle_patches_direct_kernel(ph_ref, pw_ref, x_hbm, o_hbm, sems,
                                   *, factor, th, tw, nbuf):
    # Hoist every SMEM scalar read and all offset arithmetic off the DMA issue
    # path (a .wait() in between breaks sst->sld forwarding).
    blocks = []
    for k in range(factor):                 # static unroll: factor is compile-time
        src_h = ph_ref[k] * th
        dst_h = k * th
        for j in range(factor):
            src_w = pw_ref[j] * tw
            dst_w = j * tw
            blocks.append((src_h, src_w, dst_h, dst_w))

    # Pure permuted copy: direct HBM->HBM DMAs, up to `nbuf` in flight.
    pending = []
    for idx, (src_h, src_w, dst_h, dst_w) in enumerate(blocks):
        if len(pending) == nbuf:            # reuse a slot only after its wait
            pending.pop(0).wait()
        cp = pltpu.make_async_copy(
            x_hbm.at[:, pl.ds(src_h, th), pl.ds(src_w, tw)],
            o_hbm.at[:, pl.ds(dst_h, th), pl.ds(dst_w, tw)],
            sems.at[idx % nbuf],
        )
        cp.start()
        pending.append(cp)
    for cp in pending:                      # drain before returning
        cp.wait()


# ----------------------------------------------------------------------------
# Path 2: narrow blocks -> VMEM-staged full-width stripes.
# ----------------------------------------------------------------------------
def _shuffle_patches_staged_kernel(ph_ref, pw_ref, x_ref, o_ref, *, factor, tw):
    del ph_ref  # the H permutation is applied by the input BlockSpec index_map
    # x_ref / o_ref are (bb, rr, W) VMEM stripes.  Permute W-blocks with
    # lane-aligned vreg copies so both HBM DMAs stay full-row contiguous.
    for j in range(factor):                 # static unroll
        src_w = pl.multiple_of(pw_ref[j] * tw, 128)
        o_ref[:, :, j * tw:(j + 1) * tw] = x_ref[:, :, pl.ds(src_w, tw)]


def _choose_stripe_chunks(B, th, W, itemsize, sublane,
                          budget=_VMEM_PIPELINE_BUDGET):
    """Pick (batch_chunk, row_chunk) so in+out double-buffered stripes fit."""
    def fits(bb, rr):
        return 4 * bb * rr * W * itemsize <= budget   # (in + out) x 2 buffers

    for bb in range(B, 0, -1):              # prefer the largest batch chunk
        if B % bb == 0 and fits(bb, th):
            return bb, th
    for rr in range(th, sublane - 1, -sublane):        # then split stripe rows
        if th % rr == 0 and fits(1, rr):
            return 1, rr
    return 1, sublane                        # last resort (th % sublane asserted)


# ----------------------------------------------------------------------------
# Wrapper.
# ----------------------------------------------------------------------------
def shuffle_patches(img, perm_h, perm_w, factor):
    B, H, W = img.shape
    assert H % factor == 0 and W % factor == 0, "H and W must be divisible by factor"
    th, tw = H // factor, W // factor

    itemsize = jnp.dtype(img.dtype).itemsize
    sublane = max(8, 32 // itemsize)        # f32: 8, bf16: 16, int8/fp8: 32
    # TODO(synk): block shapes that are not (sublane,128)-aligned are accepted by
    # the PyTorch module but rejected here (no slow unaligned fallback).
    assert th % sublane == 0, f"H//factor must be a multiple of {sublane} for {img.dtype}"
    assert tw % 128 == 0, "W//factor must be a multiple of 128 (lane-dense blocks)"

    cost = pl.CostEstimate(flops=0, transcendentals=0,
                           bytes_accessed=2 * B * H * W * itemsize)

    if tw * itemsize >= _DIRECT_MIN_BLOCK_BYTES:
        # Wide blocks: direct HBM->HBM copies already reach the copy roofline.
        nbuf = min(factor * factor, 16)     # deeper ring hides per-DMA latency
        kernel = functools.partial(_shuffle_patches_direct_kernel,
                                   factor=factor, th=th, tw=tw, nbuf=nbuf)
        grid_spec = pltpu.PrefetchScalarGridSpec(
            num_scalar_prefetch=2,                        # perm_h, perm_w -> SMEM
            grid=(1,),
            in_specs=[pl.BlockSpec(memory_space=pl.ANY)],  # img stays in HBM
            out_specs=pl.BlockSpec(memory_space=pl.ANY),   # written via manual DMA
            scratch_shapes=[pltpu.SemaphoreType.DMA((nbuf,))],
        )
        return pl.pallas_call(
            kernel,
            out_shape=jax.ShapeDtypeStruct((B, H, W), img.dtype),
            grid_spec=grid_spec,
            cost_estimate=cost,
            compiler_params=pltpu.CompilerParams(
                dimension_semantics=("arbitrary",)),
        )(perm_h, perm_w, img)

    # Narrow blocks: stage full-width stripes through VMEM.
    bb, rr = _choose_stripe_chunks(B, th, W, itemsize, sublane)
    nr = th // rr                                         # row chunks per H block
    kernel = functools.partial(_shuffle_patches_staged_kernel,
                               factor=factor, tw=tw)

    grid = (B // bb, factor, nr)
    # index_maps receive (grid indices..., *scalar-prefetch refs) and return
    # BLOCK indices; the H permutation is applied here via perm_h.
    in_spec = pl.BlockSpec((bb, rr, W),
                           lambda b, k, r, ph, pw: (b, ph[k] * nr + r, 0))
    out_spec = pl.BlockSpec((bb, rr, W),
                            lambda b, k, r, ph, pw: (b, k * nr + r, 0))
    grid_spec = pltpu.PrefetchScalarGridSpec(
        num_scalar_prefetch=2,
        grid=grid,
        in_specs=[in_spec],
        out_specs=out_spec,
    )
    vmem_limit = int(min(48 * 1024 * 1024,
                         max(16 * 1024 * 1024, 6 * bb * rr * W * itemsize)))
    return pl.pallas_call(
        kernel,
        out_shape=jax.ShapeDtypeStruct((B, H, W), img.dtype),
        grid_spec=grid_spec,
        cost_estimate=cost,
        compiler_params=pltpu.CompilerParams(
            dimension_semantics=("parallel", "parallel", "parallel"),
            vmem_limit_bytes=vmem_limit),
    )(perm_h, perm_w, img)


def shuffle_patches_ref(img, perm_h, perm_w, factor):
    """Pure-JAX reference reproducing the PyTorch forward semantics."""
    B, H, W = img.shape
    th, tw = H // factor, W // factor
    ph = [int(v) for v in perm_h]
    pw = [int(v) for v in perm_w]
    # step 1: shuffle W-blocks
    a = jnp.concatenate([img[..., j * tw:(j + 1) * tw] for j in pw], axis=-1)
    # step 2: permute(0,2,1), shuffle blocks along last axis (H), permute back
    # == shuffle H-blocks directly
    b = jnp.concatenate([a[:, k * th:(k + 1) * th, :] for k in ph], axis=1)
    return b


if __name__ == "__main__":
    factor = 2
    key = jax.random.PRNGKey(0)
    k_img_a, k_img_b, k_h, k_w = jax.random.split(key, 4)

    # TODO(synk): Python random.shuffle has no in-kernel equivalent; deterministic
    # permutations are drawn host-side and fed as scalar-prefetch inputs.
    perm_h = jax.random.permutation(k_h, factor).astype(jnp.int32)
    perm_w = jax.random.permutation(k_w, factor).astype(jnp.int32)

    # Config A: narrow blocks (tw*4 = 512 B < 2 KiB) -> VMEM-staged stripe path.
    img_a = jax.random.normal(k_img_a, (2, 16, 256), dtype=jnp.float32)
    out_a = jax.block_until_ready(shuffle_patches(img_a, perm_h, perm_w, factor))
    ref_a = shuffle_patches_ref(img_a, perm_h, perm_w, factor)
    assert out_a.shape == ref_a.shape and out_a.dtype == ref_a.dtype
    assert jnp.allclose(out_a, ref_a), "staged path does not match reference"

    # Config B: wide blocks (tw*4 = 2 KiB) -> direct HBM->HBM DMA path.
    img_b = jax.random.normal(k_img_b, (2, 16, 1024), dtype=jnp.float32)
    out_b = jax.block_until_ready(shuffle_patches(img_b, perm_h, perm_w, factor))
    ref_b = shuffle_patches_ref(img_b, perm_h, perm_w, factor)
    assert out_b.shape == ref_b.shape and out_b.dtype == ref_b.dtype
    assert jnp.allclose(out_b, ref_b), "direct path does not match reference"

    print("KERNEL_OK")
</pallas_src>

<mosaic_0001>
module attributes {stable_mosaic.version = 11 : i64} {
  func.func @_shuffle_patches_staged_kernel(%arg0: i32, %arg1: i32, %arg2: i32, %arg3: memref<2xi32, #tpu.memory_space<smem>>, %arg4: memref<2xi32, #tpu.memory_space<smem>>, %arg5: memref<2x8x256xf32, #tpu.memory_space<vmem>>, %arg6: memref<2x8x256xf32, #tpu.memory_space<vmem>>) attributes {dimension_semantics = [#tpu.dimension_semantics<parallel>, #tpu.dimension_semantics<parallel>, #tpu.dimension_semantics<parallel>], iteration_bounds = array<i64: 1, 2, 1>, scalar_prefetch = 2 : i64, scratch_operands = 0 : i64, tpu.core_type = #tpu.core_type<tc>, window_params = [{transform_indices = @transform_0, window_bounds = array<i64: 2, 8, 256>}, {transform_indices = @transform_1, window_bounds = array<i64: 2, 8, 256>}]} {
    %c0 = arith.constant 0 : index
    %0 = memref.load %arg4[%c0] : memref<2xi32, #tpu.memory_space<smem>>
    %c128_i32 = arith.constant 128 : i32
    %1 = arith.muli %0, %c128_i32 : i32
    %2 = tpu.assume_multiple %1, 128 : i32
    %c0_0 = arith.constant 0 : index
    %c0_1 = arith.constant 0 : index
    %3 = arith.index_cast %2 : i32 to index
    %4 = vector.load %arg5[%c0_0, %c0_1, %3] : memref<2x8x256xf32, #tpu.memory_space<vmem>>, vector<2x8x128xf32>
    %c0_2 = arith.constant 0 : index
    %c0_3 = arith.constant 0 : index
    %c0_4 = arith.constant 0 : index
    %5 = vector.load %arg6[%c0_2, %c0_3, %c0_4] : memref<2x8x256xf32, #tpu.memory_space<vmem>>, vector<2x8x128xf32>
    tpu.vector_store %arg6[%c0_2, %c0_3, %c0_4], %4 {strides = array<i32>} : memref<2x8x256xf32, #tpu.memory_space<vmem>>, vector<2x8x128xf32>,
    %c1 = arith.constant 1 : index
    %6 = memref.load %arg4[%c1] : memref<2xi32, #tpu.memory_space<smem>>
    %c128_i32_5 = arith.constant 128 : i32
    %7 = arith.muli %6, %c128_i32_5 : i32
    %8 = tpu.assume_multiple %7, 128 : i32
    %c0_6 = arith.constant 0 : index
    %c0_7 = arith.constant 0 : index
    %9 = arith.index_cast %8 : i32 to index
    %10 = vector.load %arg5[%c0_6, %c0_7, %9] : memref<2x8x256xf32, #tpu.memory_space<vmem>>, vector<2x8x128xf32>
    %c0_8 = arith.constant 0 : index
    %c0_9 = arith.constant 0 : index
    %c128 = arith.constant 128 : index
    %11 = vector.load %arg6[%c0_8, %c0_9, %c128] : memref<2x8x256xf32, #tpu.memory_space<vmem>>, vector<2x8x128xf32>
    tpu.vector_store %arg6[%c0_8, %c0_9, %c128], %10 {strides = array<i32>} : memref<2x8x256xf32, #tpu.memory_space<vmem>>, vector<2x8x128xf32>,
    return
  }
  func.func @transform_0(%arg0: i32, %arg1: i32, %arg2: i32, %arg3: memref<2xi32, #tpu.memory_space<smem>>, %arg4: memref<2xi32, #tpu.memory_space<smem>>) -> (i32, i32, i32) {
    %0 = arith.index_cast %arg1 : i32 to index
    %1 = memref.load %arg3[%0] : memref<2xi32, #tpu.memory_space<smem>>
    %c1_i32 = arith.constant 1 : i32
    %2 = arith.muli %1, %c1_i32 : i32
    %3 = arith.addi %2, %arg2 : i32
    %c0_i32 = arith.constant 0 : i32
    %c0_i32_0 = arith.constant 0 : i32
    return %arg0, %3, %c0_i32 : i32, i32, i32
  }
  func.func @transform_1(%arg0: i32, %arg1: i32, %arg2: i32, %arg3: memref<2xi32, #tpu.memory_space<smem>>, %arg4: memref<2xi32, #tpu.memory_space<smem>>) -> (i32, i32, i32) {
    %c1_i32 = arith.constant 1 : i32
    %0 = arith.muli %arg1, %c1_i32 : i32
    %1 = arith.addi %0, %arg2 : i32
    %c0_i32 = arith.constant 0 : i32
    %c0_i32_0 = arith.constant 0 : i32
    return %arg0, %1, %c0_i32 : i32, i32, i32
  }
}

</mosaic_0001>

<llo_original>
// kernel: tpu_custom_call.1
$region0: #{tpu_custom_call.1}
  #allocation0 [shape = 'u32[]', space=smem, size = 0x4, offset = 0x4, fixed_abs, tag = 'smem constant byte address 0x4 - core index']
  #allocation1 [shape = 'u32[144,128]{1,0:T(1,128)}', space=vmem, size = 0x12000, scoped, tag = 'internal scratch']
  #allocation2 [shape = 's32[1]{0}', space=sflag, size = 0x4, scoped, tag = 'scoped memory for tpu_custom_call.1']
  #allocation3 [shape = 'u8[512]{0}', space=smem, size = 0x200, scoped, tag = 'prefetched SMEM operand 0']
  #allocation4 [shape = 'u8[512]{0}', space=smem, size = 0x200, scoped, tag = 'prefetched SMEM operand 1']
  %s0 = inlined_call_operand.hbm [shape: s32[2], index: 0, kind: input, shape index: {}]
  %s1 = inlined_call_operand.vmem [shape: s32[2], index: 1, kind: input, shape index: {}]
  %s2 = inlined_call_operand.hbm [shape: f32[2,16,256], index: 2, kind: input, shape index: {}]
  %s3 = inlined_call_operand.hbm [shape: f32[2,16,256], index: 3, kind: output, shape index: {}]
  %s4 = sld [smem:[#allocation0]]
  $region41: #{tpu_custom_call.1} parent=0
    _
  %s6 = ssub.s32 1, %s4
  %s7 = scalar_select 0, %s6, %s4
  %9 = dma.hbm_to_smem %s0, 16, [#allocation3], [#allocation2]
  %s10 = sshll.u32 %s1, 4
  %s11 = int_to_ptr.vmem [resolvable:$true] %s10
  %13 = dma.vmem_to_smem %s11, 16, [#allocation4], [#allocation2]
  %14 = dma.done [#allocation2], 32
  %15 = sfence
  $region1: #{tpu_custom_call.1} parent=0
    #allocation5 [shape = 'u8[32768]{0}', space=vmem, size = 0x8000, scoped, tag = 'input window, operand 2']
    #allocation6 [shape = 's32[2]{0}', space=sflag, size = 0x8, scoped, tag = 'scoped memory for tpu_custom_call.1']
    #allocation7 [shape = 's32[2]{0}', space=sflag, size = 0x8, scoped, tag = 'scoped memory for tpu_custom_call.1']
    #allocation8 [shape = 'u8[32768]{0}', space=vmem, size = 0x8000, scoped, tag = 'output window, operand 0']
    %16 = vsyncpa [#allocation6], 0
    %s17 = scalar_lea.sflag [#allocation6], 1
    %18 = vsyncpa %s17, 0
    %19 = vsyncpa [#allocation7], 0
    %s20 = scalar_lea.sflag [#allocation7], 1
    %21 = vsyncpa %s20, 0
    loop: start=0, step=1, limit=4
    $region2: #{tpu_custom_call.1} parent=1 // loop_pre_header
      _
    $region3: #{tpu_custom_call.1} parent=1 // loop_header
      %s23 = sphi 0, %s27
      %p24 = scmp.ge.s32.totalorder %s23, 4
      %s30 = sphi 0, %s49
      %s31 = sphi 0, %s45
      %s32 = sphi 0, %s41
      %s33 = sphi 0, %s30
      %s34 = sphi 0, %s31
      %s35 = sphi 0, %s32
      %s36 = sphi 0, %s33
      %s37 = sphi 0, %s34
      %s38 = sphi 0, %s35
      %s58 = sphi 0, %s60
      %s61 = sphi 0, %s58
      %s62 = sphi 0, %s61
      %s78 = sphi 0, %s62
      %s88 = sphi 0, %s90
      %s91 = sphi 0, %s88
      %s92 = sphi 0, %s91
      %s108 = sphi 0, %s92
    $region4: #{tpu_custom_call.1} parent=1 // loop_header_branch
      %26 = sbr.rel (%p24) target = $region8
    $region5: #{tpu_custom_call.1} parent=1 // loop_body
      %s28 = ssub.s32 %s23, 1
      %s29 = ssub.s32 %s23, 2
      %s39 = sadd.s32 1, %s32
      %p40 = scmp.ge.s32.totalorder %s39, 1
      %s41 = scalar_select %p40, 0, %s39
      %s42 = sadd.s32 1, %s31
      %s43 = scalar_select %p40, %s42, %s31
      %p44 = scmp.ge.s32.totalorder %s43, 2
      %s45 = scalar_select %p44, 0, %s43
      %s46 = sadd.s32 1, %s30
      %s47 = scalar_select %p44, %s46, %s30
      %p48 = scmp.ge.s32.totalorder %s47, 1
      %s49 = scalar_select %p48, 0, %s47
      %s50 = sld [smem:[#allocation3 + %s31]]
      %s51 = sadd.s32 %s50, %s32
      %s52 = sld [smem:[#allocation3 + %s45]]
      %s53 = sadd.s32 %s52, %s41
      %s54 = ssub.s32 %s30, %s49
      %s55 = ssub.s32 %s51, %s53
      %s56 = sor.u32 %s54, %s55
      %p57 = scmp.eq.s32.totalorder %s56, 0
      %s59 = sadd.s32 %s58, 1
      %s60 = scalar_select %p57, %s58, %s59
      %p63 = pneg %p57
      %p64 = scmp.eq.s32.totalorder %s23, 1
      %p65 = por %p63, %p64
      %p66 = scmp.ne.s32.totalorder %s58, %s61
      %p67 = scmp.eq.s32.totalorder %s23, 0
      %p68 = por %p66, %p67
      %p69 = scmp.ne.s32.totalorder %s58, %s61
      %p70 = scmp.eq.s32.totalorder %s28, 1
      %p71 = por %p69, %p70
      %p72 = scmp.ne.s32.totalorder %s61, %s62
      %p73 = scmp.eq.s32.totalorder %s28, 0
      %p74 = por %p72, %p73
      %p75 = scmp.ne.s32.totalorder %s61, %s62
      %p76 = scmp.eq.s32.totalorder %s29, 1
      %p77 = por %p75, %p76
      %p79 = scmp.ne.s32.totalorder %s62, %s78
      %p80 = scmp.eq.s32.totalorder %s29, 0
      %p81 = por %p79, %p80
      %s82 = sadd.s32 %s31, %s32
      %s83 = sadd.s32 %s45, %s41
      %s84 = ssub.s32 %s30, %s49
      %s85 = ssub.s32 %s82, %s83
      %s86 = sor.u32 %s84, %s85
      %p87 = scmp.eq.s32.totalorder %s86, 0
      %s89 = sadd.s32 %s88, 1
      %s90 = scalar_select %p87, %s88, %s89
      %p93 = pneg %p87
      %p94 = scmp.eq.s32.totalorder %s23, 1
      %p95 = por %p93, %p94
      %p96 = scmp.ne.s32.totalorder %s88, %s91
      %p97 = scmp.eq.s32.totalorder %s23, 0
      %p98 = por %p96, %p97
      %p99 = scmp.ne.s32.totalorder %s88, %s91
      %p100 = scmp.eq.s32.totalorder %s28, 1
      %p101 = por %p99, %p100
      %p102 = scmp.ne.s32.totalorder %s91, %s92
      %p103 = scmp.eq.s32.totalorder %s28, 0
      %p104 = por %p102, %p103
      %p105 = scmp.ne.s32.totalorder %s91, %s92
      %p106 = scmp.eq.s32.totalorder %s29, 1
      %p107 = por %p105, %p106
      %p109 = scmp.ne.s32.totalorder %s92, %s108
      %p110 = scmp.eq.s32.totalorder %s29, 0
      %p111 = por %p109, %p110
      %p112 = scmp.le.s32.totalorder 1, %s23
      %p113 = scmp.lt.s32.totalorder %s23, 3
      %p114 = pnand %p112, %p113
      %p115 = pneg %p114
      // Predicated region
      $region9: #{tpu_custom_call.1} parent=5 // pred_check
        _
      $region10: #{tpu_custom_call.1} parent=5 // pred_check_branch
        %117 = sbr.rel (%p114) target = $region12
      $region11: #{tpu_custom_call.1} parent=5 // pred_region
        %s118 = ssub.s32 %s23, 1
      $region12: #{tpu_custom_call.1} parent=5 // pred_fallthru
        _
      %p119 = scmp.lt.s32.totalorder %s23, 2
      // Predicated region
      $region13: #{tpu_custom_call.1} parent=5 // pred_check
        %p120 = pneg %p119
      $region14: #{tpu_custom_call.1} parent=5 // pred_check_branch
        %122 = sbr.rel (%p120) target = $region16
      $region15: #{tpu_custom_call.1} parent=5 // pred_region
        // Predicated region
        $region17: #{tpu_custom_call.1} parent=15 // pred_check
          %p123 = pneg %p68
        $region18: #{tpu_custom_call.1} parent=15 // pred_check_branch
          %125 = sbr.rel (%p123) target = $region20
        $region19: #{tpu_custom_call.1} parent=15 // pred_region
          %s126 = sand.u32 %s58, 1
          %s127 = scalar_lea.sflag [#allocation6], %s126
          %s128 = sand.u32 %s58, 1
          %s129 = smul.addr %s128, 32
          %s130 = scalar_lea.vmem [#allocation5], %s129
          %s131 = sld [smem:[#allocation3 + %s31]]
          %s132 = sadd.s32 %s131, %s32
          %s133 = smul.u32 2, %s30
          %s135 = ssub.s32 512, 512
          %136 = vsyncadd %s127, %s135
          %s137 = smul.addr %s132, 2
          %s138 = smul.addr %s133, 4
          %s139 = sadd.s32 %s137, %s138
          %s140 = smul.addr %s139, 128
          %s141 = scalar_lea.hbm %s2, %s140
          %s142 = sshll.u32 %s130, 4
          %s143 = int_to_ptr.vmem [resolvable:$true] %s142
          %148 = dma.hbm_to_vmem [thread:$0]  %s141, 512, %s143, %s127, 512, 256, 16
        $region20: #{tpu_custom_call.1} parent=15 // pred_fallthru
          _
      $region16: #{tpu_custom_call.1} parent=5 // pred_fallthru
        _
      %p149 = scmp.le.s32.totalorder 1, %s23
      %p150 = scmp.lt.s32.totalorder %s23, 3
      %p151 = pnand %p149, %p150
      %p152 = pneg %p151
      // Predicated region
      $region21: #{tpu_custom_call.1} parent=5 // pred_check
        _
      $region22: #{tpu_custom_call.1} parent=5 // pred_check_branch
        %154 = sbr.rel (%p151) target = $region24
      $region23: #{tpu_custom_call.1} parent=5 // pred_region
        %s155 = ssub.s32 %s23, 1
        %s156 = sand.u32 %s61, 1
        %s157 = scalar_lea.sflag [#allocation6], %s156
        %s158 = sand.u32 %s61, 1
        %s159 = smul.addr %s158, 32
        %s160 = scalar_lea.vmem [#allocation5], %s159
        // Predicated region
        $region25: #{tpu_custom_call.1} parent=23 // pred_check
          %p161 = pneg %p74
        $region26: #{tpu_custom_call.1} parent=23 // pred_check_branch
          %163 = sbr.rel (%p161) target = $region28
        $region27: #{tpu_custom_call.1} parent=23 // pred_region
          %164 = dma.done %s157, 512
        $region28: #{tpu_custom_call.1} parent=23 // pred_fallthru
          _
        %s165 = sand.u32 %s61, 1
        %s166 = scalar_lea.sflag [#allocation6], %s165
        %s167 = sand.u32 %s61, 1
        %s168 = smul.addr %s167, 32
        %s169 = scalar_lea.vmem [#allocation5], %s168
        %p170 = pneg %p74
        %p171 = pneg %p71
        %p172 = pneg %p104
        %p173 = pneg %p101
        %s174 = sand.u32 %s91, 1
        %s175 = scalar_lea.sflag [#allocation7], %s174
        %s176 = sand.u32 %s91, 1
        %s177 = smul.addr %s176, 32
        %s178 = scalar_lea.vmem [#allocation8], %s177
        %s179 = sld [smem:[#allocation3 + %s34]]
        %s180 = sadd.s32 %s179, %s35
        %s181 = smul.u32 2, %s33
        %s182 = sadd.s32 %s34, %s35
        %s183 = smul.u32 2, %s33
        %s184 = sld [smem:[#allocation4]]
        %s185 = smul.u32 %s184, 128
        %s186 = sshra.s32 %s185, 7
        %s187 = sand.u32 %s185, 127
        %s188 = smul.addr %s186, 8
        %s189 = scalar_lea.vmem %s160, %s188 [#allocation5]
        %v190 = vld [vmem:[%s189] sm:$0xff]
        %v191 = vld [vmem:[%s189 + $0x10] sm:$0xff]
        %192 = vst [vmem:[%s178] sm:$0xff] %v190
        %193 = vst [vmem:[%s178 + $0x10] sm:$0xff] %v191
        %s194 = sld [smem:[#allocation4 + $0x1]]
        %s195 = smul.u32 %s194, 128
        %s196 = sshra.s32 %s195, 7
        %s197 = sand.u32 %s195, 127
        %s198 = smul.addr %s196, 8
        %s199 = scalar_lea.vmem %s160, %s198 [#allocation5]
        %v200 = vld [vmem:[%s199] sm:$0xff]
        %v201 = vld [vmem:[%s199 + $0x10] sm:$0xff]
        %202 = vst [vmem:[%s178 + $0x8] sm:$0xff] %v200
        %203 = vst [vmem:[%s178 + $0x18] sm:$0xff] %v201
        %s204 = sand.u32 %s91, 1
        %s205 = scalar_lea.sflag [#allocation7], %s204
        %s206 = sand.u32 %s91, 1
        %s207 = smul.addr %s206, 32
        %s208 = scalar_lea.vmem [#allocation8], %s207
        // Predicated region
        $region29: #{tpu_custom_call.1} parent=23 // pred_check
          %p209 = pneg %p101
        $region30: #{tpu_custom_call.1} parent=23 // pred_check_branch
          %211 = sbr.rel (%p209) target = $region32
        $region31: #{tpu_custom_call.1} parent=23 // pred_region
          %s212 = sadd.s32 %s34, %s35
          %s213 = smul.u32 2, %s33
          %s215 = ssub.s32 512, 512
          %216 = vsyncadd %s205, %s215
          %s217 = smul.addr %s212, 2
          %s218 = smul.addr %s213, 4
          %s219 = sadd.s32 %s217, %s218
          %s220 = smul.addr %s219, 128
          %s221 = scalar_lea.hbm %s3, %s220
          %s222 = sshll.u32 %s208, 4
          %s223 = int_to_ptr.vmem [resolvable:$true] %s222
          %228 = dma.vmem_to_hbm [thread:$0]  %s223, 512, %s221, %s205, 256, 512, 16
        $region32: #{tpu_custom_call.1} parent=23 // pred_fallthru
          _
      $region24: #{tpu_custom_call.1} parent=5 // pred_fallthru
        _
      %p229 = scmp.le.s32.totalorder 2, %s23
      // Predicated region
      $region33: #{tpu_custom_call.1} parent=5 // pred_check
        %p230 = pneg %p229
      $region34: #{tpu_custom_call.1} parent=5 // pred_check_branch
        %232 = sbr.rel (%p230) target = $region36
      $region35: #{tpu_custom_call.1} parent=5 // pred_region
        %s233 = ssub.s32 %s23, 2
        // Predicated region
        $region37: #{tpu_custom_call.1} parent=35 // pred_check
          %p234 = pneg %p107
        $region38: #{tpu_custom_call.1} parent=35 // pred_check_branch
          %236 = sbr.rel (%p234) target = $region40
        $region39: #{tpu_custom_call.1} parent=35 // pred_region
          %s237 = sand.u32 %s92, 1
          %s238 = scalar_lea.sflag [#allocation7], %s237
          %s239 = sand.u32 %s92, 1
          %s240 = smul.addr %s239, 32
          %s241 = scalar_lea.vmem [#allocation8], %s240
          %242 = dma.done %s238, 512
        $region40: #{tpu_custom_call.1} parent=35 // pred_fallthru
          _
      $region36: #{tpu_custom_call.1} parent=5 // pred_fallthru
        _
    $region6: #{tpu_custom_call.1} parent=1 // loop_footer
      %s27 = sadd.s32 1, %s23
    $region7: #{tpu_custom_call.1} parent=1 // loop_footer_branch
      %22 = sbr.rel target = $region3
    $region8: #{tpu_custom_call.1} parent=1 // loop_exit
      _
    %243 = vsyncpa [#allocation6], 1
    %s244 = scalar_lea.sflag [#allocation6], 1
    %245 = vsyncpa %s244, 1
    %246 = vsyncpa [#allocation7], 1
    %s247 = scalar_lea.sflag [#allocation7], 1
    %248 = vsyncpa %s247, 1

</llo_original>
